<compile_context>
chip_gen: v5e
topology: v5e:2x2
jax: 0.10.0
libtpu: 0.0.40
codegen_flags: <defaults>
</compile_context>

<pallas_src>
import functools
import math

import jax
import jax.numpy as jnp
from jax.experimental import pallas as pl
from jax.experimental.pallas import tpu as pltpu

_LN_EPS = 1e-5          # PyTorch nn.LayerNorm default eps
_LANE = 128             # lane width / min lane-dense last dim
_VMEM_BUDGET = 48 * 1024 * 1024   # conservative per-core budget (v7x = 64 MiB)


def _round_up(x, m):
    return ((x + m - 1) // m) * m


def _cdiv(a, b):
    return (a + b - 1) // b


# ----------------------------------------------------------------------------
# Fused kernel: LayerNorm -> fc1 -> ReLU -> fc2 -> ReLU -> fc3
# ----------------------------------------------------------------------------
def _classifier_block_kernel(x_ref, g_ref, beta_ref,
                             w1_ref, b1_ref, w2_ref, b2_ref, w3_ref, b3_ref,
                             o_ref):
    """x_ref: (TM, D); w*: bf16 (Din, Dout); b*/ln params: f32 (1, D*)."""
    x = x_ref[...].astype(jnp.float32)                        # (TM, D)

    # Two-pass LayerNorm (numerically stable), all stats in f32.
    mean = jnp.mean(x, axis=-1, keepdims=True)                # (TM, 1)
    xc = x - mean
    var = jnp.mean(xc * xc, axis=-1, keepdims=True)           # (TM, 1)
    inv = jax.lax.rsqrt(var + _LN_EPS)                        # (TM, 1)
    xn = xc * inv * g_ref[...] + beta_ref[...]                # (TM, D) f32

    # GEMMs: bf16 operands into the MXU, f32 accumulation, f32 epilogue.
    h = jnp.dot(xn.astype(jnp.bfloat16), w1_ref[...],
                preferred_element_type=jnp.float32) + b1_ref[...]
    h = jnp.maximum(h, 0.0)
    h = jnp.dot(h.astype(jnp.bfloat16), w2_ref[...],
                preferred_element_type=jnp.float32) + b2_ref[...]
    h = jnp.maximum(h, 0.0)
    y = jnp.dot(h.astype(jnp.bfloat16), w3_ref[...],
                preferred_element_type=jnp.float32) + b3_ref[...]

    o_ref[...] = y.astype(o_ref.dtype)


# ----------------------------------------------------------------------------
# BlockSpec helpers
# ----------------------------------------------------------------------------
def _const_spec(shape):
    """Grid-invariant operand: single-buffer it (no benefit from pipelining)."""
    index_map = lambda i, _shape=shape: (0,) * len(_shape)
    try:
        return pl.BlockSpec(shape, index_map, pipeline_mode=pl.Buffered(1))
    except TypeError:  # jax version without pipeline_mode kwarg
        return pl.BlockSpec(shape, index_map)


def _pad2(a, r, c):
    pr, pc = r - a.shape[0], c - a.shape[1]
    if pr == 0 and pc == 0:
        return a
    return jnp.pad(a, ((0, pr), (0, pc)))


def _est_vmem_bytes(tm, D, h1p, h2p, outp, x_bytes, out_bytes):
    # double-buffered x tile + output tile, f32 temporaries headroom,
    # single-buffered bf16 weights + f32 biases / LN params.
    act = 2 * tm * D * x_bytes + 2 * tm * outp * out_bytes
    tmp = 4 * tm * max(D, h1p, h2p, outp) * 4
    wts = (D * h1p + h1p * h2p + h2p * outp) * 2
    small = (2 * D + h1p + h2p + outp) * 4
    return act + tmp + wts + small


# ----------------------------------------------------------------------------
# Wrapper
# ----------------------------------------------------------------------------
@functools.partial(jax.jit, static_argnames=("block_rows",))
def classifier_block_forward(x, params, *, block_rows=512):
    """x: (..., in_dim) -> (..., out_dim)."""
    *lead, D = x.shape
    M = int(math.prod(lead)) if lead else 1
    x2 = x.reshape(M, D)          # native dtype; upcast happens inside kernel

    h1 = params["w1"].shape[1]
    h2 = params["w2"].shape[1]
    out_dim = params["w3"].shape[1]

    # Lane-dense padding of hidden / output feature dims (multiples of 128).
    h1p = _round_up(h1, _LANE)
    h2p = _round_up(h2, _LANE)
    outp = _round_up(out_dim, _LANE)

    w1 = _pad2(params["w1"].astype(jnp.bfloat16), D, h1p)
    w2 = _pad2(params["w2"].astype(jnp.bfloat16), h1p, h2p)
    w3 = _pad2(params["w3"].astype(jnp.bfloat16), h2p, outp)
    b1 = _pad2(params["b1"].astype(jnp.float32), 1, h1p)
    b2 = _pad2(params["b2"].astype(jnp.float32), 1, h2p)
    b3 = _pad2(params["b3"].astype(jnp.float32), 1, outp)
    ln_g = params["ln_g"].astype(jnp.float32)
    ln_b = params["ln_b"].astype(jnp.float32)

    # Row tile: as large as the VMEM budget allows, multiple of 8.
    x_bytes = x.dtype.itemsize
    out_dtype = x.dtype
    out_bytes = jnp.dtype(out_dtype).itemsize
    tm = min(block_rows, _round_up(M, 8))
    while (tm > 64 and
           _est_vmem_bytes(tm, D, h1p, h2p, outp, x_bytes, out_bytes)
           > _VMEM_BUDGET):
        tm = _round_up(tm // 2, 8)

    # Give the megacore something to shard: ensure >= 2 grid steps if possible.
    if M > 8 and _round_up(M, tm) // tm < 2:
        tm = _round_up(_cdiv(M, 2), 8)

    Mp = _round_up(M, tm)
    if Mp != M:
        x2 = jnp.pad(x2, ((0, Mp - M), (0, 0)))

    out = pl.pallas_call(
        _classifier_block_kernel,
        out_shape=jax.ShapeDtypeStruct((Mp, outp), out_dtype),
        grid=(Mp // tm,),
        in_specs=[
            pl.BlockSpec((tm, D), lambda i: (i, 0)),   # x rows (pipelined)
            _const_spec((1, D)),                       # ln gamma
            _const_spec((1, D)),                       # ln beta
            _const_spec((D, h1p)),                     # w1 (bf16)
            _const_spec((1, h1p)),                     # b1
            _const_spec((h1p, h2p)),                   # w2 (bf16)
            _const_spec((1, h2p)),                     # b2
            _const_spec((h2p, outp)),                  # w3 (bf16)
            _const_spec((1, outp)),                    # b3
        ],
        out_specs=pl.BlockSpec((tm, outp), lambda i: (i, 0)),
        compiler_params=pltpu.CompilerParams(
            dimension_semantics=("parallel",),
            vmem_limit_bytes=64 * 1024 * 1024),
    )(x2, ln_g, ln_b, w1, b1, w2, b2, w3, b3)

    out = out[:M, :out_dim]
    return out.reshape(*lead, out_dim)


# ----------------------------------------------------------------------------
# Deterministic parameter init (matches ClassifierBlock._init_weights)
# ----------------------------------------------------------------------------
def init_params(key, in_dim, out_dim, mlp_ratio=2):
    h1 = in_dim // mlp_ratio
    h2 = in_dim // (mlp_ratio * 2)
    k1, k2, k3 = jax.random.split(key, 3)

    def trunc(k, shape, std=0.02, a=-2.0, b=2.0):
        # PyTorch trunc_normal_(std=0.02, a=-2, b=2): ABSOLUTE bounds +-2,
        # i.e. +-100 sigma -> effectively an untruncated N(0, 0.02^2).
        return std * jax.random.truncated_normal(k, a / std, b / std, shape,
                                                 jnp.float32)

    return {
        "ln_g": jnp.ones((1, in_dim), jnp.float32),
        "ln_b": jnp.zeros((1, in_dim), jnp.float32),
        # Stored as (in, out) bf16 -- transpose of PyTorch's (out, in).
        "w1": trunc(k1, (in_dim, h1)).astype(jnp.bfloat16),
        "b1": jnp.zeros((1, h1), jnp.float32),
        "w2": trunc(k2, (h1, h2)).astype(jnp.bfloat16),
        "b2": jnp.zeros((1, h2), jnp.float32),
        "w3": trunc(k3, (h2, out_dim)).astype(jnp.bfloat16),
        "b3": jnp.zeros((1, out_dim), jnp.float32),
    }


# ----------------------------------------------------------------------------
# Pure-JAX reference (mirrors the kernel's precision path for the check)
# ----------------------------------------------------------------------------
def _ref_forward(x, params):
    x = x.astype(jnp.float32)
    mean = x.mean(-1, keepdims=True)
    xc = x - mean
    var = (xc * xc).mean(-1, keepdims=True)
    xn = xc * jax.lax.rsqrt(var + _LN_EPS) * params["ln_g"][0] + params["ln_b"][0]
    h = jnp.dot(xn.astype(jnp.bfloat16), params["w1"],
                preferred_element_type=jnp.float32) + params["b1"][0]
    h = jnp.maximum(h, 0.0)
    h = jnp.dot(h.astype(jnp.bfloat16), params["w2"],
                preferred_element_type=jnp.float32) + params["b2"][0]
    h = jnp.maximum(h, 0.0)
    return jnp.dot(h.astype(jnp.bfloat16), params["w3"],
                   preferred_element_type=jnp.float32) + params["b3"][0]


# ----------------------------------------------------------------------------
# Main
# ----------------------------------------------------------------------------
if __name__ == "__main__":
    IN_DIM, OUT_DIM, MLP_RATIO = 32, 4, 2
    B, S = 2, 8  # x: (batch, seq, in_dim)
    # NOTE: at these demo sizes the kernel is pure launch/DMA overhead; real
    # benchmarking should use D >= 1024 and M >= 4096 (same code path).

    key = jax.random.PRNGKey(0)
    key, pkey, xkey = jax.random.split(key, 3)

    params = init_params(pkey, IN_DIM, OUT_DIM, MLP_RATIO)
    x = jax.random.normal(xkey, (B, S, IN_DIM), jnp.float32)

    out = jax.block_until_ready(classifier_block_forward(x, params))

    assert out.shape == (B, S, OUT_DIM), out.shape
    assert out.dtype == x.dtype, out.dtype
    assert bool(jnp.all(jnp.isfinite(out)))

    ref = _ref_forward(x, params)
    max_err = float(jnp.max(jnp.abs(out - ref)))
    assert bool(jnp.allclose(out, ref, atol=1e-3, rtol=1e-3)), max_err

    print("KERNEL_OK")
</pallas_src>

<mosaic_0001>
module attributes {stable_mosaic.version = 11 : i64} {
  func.func @_classifier_block_kernel(%arg0: i32, %arg1: memref<8x32xf32, #tpu.memory_space<vmem>>, %arg2: memref<1x32xf32, #tpu.memory_space<vmem>>, %arg3: memref<1x32xf32, #tpu.memory_space<vmem>>, %arg4: memref<32x128xbf16, #tpu.memory_space<vmem>>, %arg5: memref<1x128xf32, #tpu.memory_space<vmem>>, %arg6: memref<128x128xbf16, #tpu.memory_space<vmem>>, %arg7: memref<1x128xf32, #tpu.memory_space<vmem>>, %arg8: memref<128x128xbf16, #tpu.memory_space<vmem>>, %arg9: memref<1x128xf32, #tpu.memory_space<vmem>>, %arg10: memref<8x128xf32, #tpu.memory_space<vmem>>) attributes {dimension_semantics = [#tpu.dimension_semantics<parallel>], iteration_bounds = array<i64: 2>, scalar_prefetch = 0 : i64, scratch_operands = 0 : i64, tpu.core_type = #tpu.core_type<tc>, window_params = [{transform_indices = @transform_0, window_bounds = array<i64: 8, 32>}, {pipeline_mode = #tpu.pipeline_mode<synchronous>, transform_indices = @transform_1, window_bounds = array<i64: 1, 32>}, {pipeline_mode = #tpu.pipeline_mode<synchronous>, transform_indices = @transform_2, window_bounds = array<i64: 1, 32>}, {pipeline_mode = #tpu.pipeline_mode<synchronous>, transform_indices = @transform_3, window_bounds = array<i64: 32, 128>}, {pipeline_mode = #tpu.pipeline_mode<synchronous>, transform_indices = @transform_4, window_bounds = array<i64: 1, 128>}, {pipeline_mode = #tpu.pipeline_mode<synchronous>, transform_indices = @transform_5, window_bounds = array<i64: 128, 128>}, {pipeline_mode = #tpu.pipeline_mode<synchronous>, transform_indices = @transform_6, window_bounds = array<i64: 1, 128>}, {pipeline_mode = #tpu.pipeline_mode<synchronous>, transform_indices = @transform_7, window_bounds = array<i64: 128, 128>}, {pipeline_mode = #tpu.pipeline_mode<synchronous>, transform_indices = @transform_8, window_bounds = array<i64: 1, 128>}, {transform_indices = @transform_9, window_bounds = array<i64: 8, 128>}]} {
    %c0 = arith.constant 0 : index
    %c0_0 = arith.constant 0 : index
    %0 = vector.load %arg1[%c0, %c0_0] : memref<8x32xf32, #tpu.memory_space<vmem>>, vector<8x32xf32>
    %cst = arith.constant dense<0.000000e+00> : vector<8xf32>
    %1 = vector.multi_reduction <add>, %0, %cst [1] : vector<8x32xf32> to vector<8xf32>
    %2 = vector.shape_cast %1 : vector<8xf32> to vector<8x1xf32>
    %cst_1 = arith.constant 3.200000e+01 : f32
    %3 = vector.broadcast %cst_1 : f32 to vector<8x1xf32>
    %4 = arith.divf %2, %3 : vector<8x1xf32>
    %5 = vector.broadcast %4 : vector<8x1xf32> to vector<8x32xf32>
    %6 = arith.subf %0, %5 : vector<8x32xf32>
    %7 = arith.mulf %6, %6 : vector<8x32xf32>
    %cst_2 = arith.constant dense<0.000000e+00> : vector<8xf32>
    %8 = vector.multi_reduction <add>, %7, %cst_2 [1] : vector<8x32xf32> to vector<8xf32>
    %9 = vector.shape_cast %8 : vector<8xf32> to vector<8x1xf32>
    %cst_3 = arith.constant 3.200000e+01 : f32
    %10 = vector.broadcast %cst_3 : f32 to vector<8x1xf32>
    %11 = arith.divf %9, %10 : vector<8x1xf32>
    %cst_4 = arith.constant 9.99999974E-6 : f32
    %12 = vector.broadcast %cst_4 : f32 to vector<8x1xf32>
    %13 = arith.addf %11, %12 : vector<8x1xf32>
    %14 = math.rsqrt %13 : vector<8x1xf32>
    %15 = vector.broadcast %14 : vector<8x1xf32> to vector<8x32xf32>
    %16 = arith.mulf %6, %15 : vector<8x32xf32>
    %c0_5 = arith.constant 0 : index
    %c0_6 = arith.constant 0 : index
    %17 = vector.load %arg2[%c0_5, %c0_6] : memref<1x32xf32, #tpu.memory_space<vmem>>, vector<1x32xf32>
    %18 = vector.broadcast %17 : vector<1x32xf32> to vector<8x32xf32>
    %19 = arith.mulf %16, %18 : vector<8x32xf32>
    %c0_7 = arith.constant 0 : index
    %c0_8 = arith.constant 0 : index
    %20 = vector.load %arg3[%c0_7, %c0_8] : memref<1x32xf32, #tpu.memory_space<vmem>>, vector<1x32xf32>
    %21 = vector.broadcast %20 : vector<1x32xf32> to vector<8x32xf32>
    %22 = arith.addf %19, %21 : vector<8x32xf32>
    %23 = arith.truncf %22 : vector<8x32xf32> to vector<8x32xbf16>
    %c0_9 = arith.constant 0 : index
    %c0_10 = arith.constant 0 : index
    %24 = vector.load %arg4[%c0_9, %c0_10] : memref<32x128xbf16, #tpu.memory_space<vmem>>, vector<32x128xbf16>
    %cst_11 = arith.constant dense<0.000000e+00> : vector<8x128xf32>
    %25 = tpu.matmul %23, %24, %cst_11 {dimension_numbers = #tpu.dot_dimension_numbers<[1], [0], [0], [1], [0, 0, 1, 1], [], []>} : vector<8x32xbf16>, vector<32x128xbf16>, vector<8x128xf32> -> vector<8x128xf32>
    %c0_12 = arith.constant 0 : index
    %c0_13 = arith.constant 0 : index
    %26 = vector.load %arg5[%c0_12, %c0_13] : memref<1x128xf32, #tpu.memory_space<vmem>>, vector<1x128xf32>
    %27 = vector.broadcast %26 : vector<1x128xf32> to vector<8x128xf32>
    %28 = arith.addf %25, %27 : vector<8x128xf32>
    %cst_14 = arith.constant 0.000000e+00 : f32
    %29 = vector.broadcast %cst_14 : f32 to vector<8x128xf32>
    %30 = arith.maximumf %28, %29 : vector<8x128xf32>
    %31 = arith.truncf %30 : vector<8x128xf32> to vector<8x128xbf16>
    %c0_15 = arith.constant 0 : index
    %c0_16 = arith.constant 0 : index
    %32 = vector.load %arg6[%c0_15, %c0_16] : memref<128x128xbf16, #tpu.memory_space<vmem>>, vector<128x128xbf16>
    %cst_17 = arith.constant dense<0.000000e+00> : vector<8x128xf32>
    %33 = tpu.matmul %31, %32, %cst_17 {dimension_numbers = #tpu.dot_dimension_numbers<[1], [0], [0], [1], [0, 0, 1, 1], [], []>} : vector<8x128xbf16>, vector<128x128xbf16>, vector<8x128xf32> -> vector<8x128xf32>
    %c0_18 = arith.constant 0 : index
    %c0_19 = arith.constant 0 : index
    %34 = vector.load %arg7[%c0_18, %c0_19] : memref<1x128xf32, #tpu.memory_space<vmem>>, vector<1x128xf32>
    %35 = vector.broadcast %34 : vector<1x128xf32> to vector<8x128xf32>
    %36 = arith.addf %33, %35 : vector<8x128xf32>
    %cst_20 = arith.constant 0.000000e+00 : f32
    %37 = vector.broadcast %cst_20 : f32 to vector<8x128xf32>
    %38 = arith.maximumf %36, %37 : vector<8x128xf32>
    %39 = arith.truncf %38 : vector<8x128xf32> to vector<8x128xbf16>
    %c0_21 = arith.constant 0 : index
    %c0_22 = arith.constant 0 : index
    %40 = vector.load %arg8[%c0_21, %c0_22] : memref<128x128xbf16, #tpu.memory_space<vmem>>, vector<128x128xbf16>
    %cst_23 = arith.constant dense<0.000000e+00> : vector<8x128xf32>
    %41 = tpu.matmul %39, %40, %cst_23 {dimension_numbers = #tpu.dot_dimension_numbers<[1], [0], [0], [1], [0, 0, 1, 1], [], []>} : vector<8x128xbf16>, vector<128x128xbf16>, vector<8x128xf32> -> vector<8x128xf32>
    %c0_24 = arith.constant 0 : index
    %c0_25 = arith.constant 0 : index
    %42 = vector.load %arg9[%c0_24, %c0_25] : memref<1x128xf32, #tpu.memory_space<vmem>>, vector<1x128xf32>
    %43 = vector.broadcast %42 : vector<1x128xf32> to vector<8x128xf32>
    %44 = arith.addf %41, %43 : vector<8x128xf32>
    %c0_26 = arith.constant 0 : index
    %c0_27 = arith.constant 0 : index
    %45 = vector.load %arg10[%c0_26, %c0_27] : memref<8x128xf32, #tpu.memory_space<vmem>>, vector<8x128xf32>
    tpu.vector_store %arg10[%c0_26, %c0_27], %44 {strides = array<i32>} : memref<8x128xf32, #tpu.memory_space<vmem>>, vector<8x128xf32>,
    return
  }
  func.func @transform_0(%arg0: i32) -> (i32, i32) {
    %c0_i32 = arith.constant 0 : i32
    %c0_i32_0 = arith.constant 0 : i32
    return %arg0, %c0_i32 : i32, i32
  }
  func.func @transform_1(%arg0: i32) -> (i32, i32) {
    %c0_i32 = arith.constant 0 : i32
    %c0_i32_0 = arith.constant 0 : i32
    %c0_i32_1 = arith.constant 0 : i32
    return %c0_i32, %c0_i32_0 : i32, i32
  }
  func.func @transform_2(%arg0: i32) -> (i32, i32) {
    %c0_i32 = arith.constant 0 : i32
    %c0_i32_0 = arith.constant 0 : i32
    %c0_i32_1 = arith.constant 0 : i32
    return %c0_i32, %c0_i32_0 : i32, i32
  }
  func.func @transform_3(%arg0: i32) -> (i32, i32) {
    %c0_i32 = arith.constant 0 : i32
    %c0_i32_0 = arith.constant 0 : i32
    %c0_i32_1 = arith.constant 0 : i32
    return %c0_i32, %c0_i32_0 : i32, i32
  }
  func.func @transform_4(%arg0: i32) -> (i32, i32) {
    %c0_i32 = arith.constant 0 : i32
    %c0_i32_0 = arith.constant 0 : i32
    %c0_i32_1 = arith.constant 0 : i32
    return %c0_i32, %c0_i32_0 : i32, i32
  }
  func.func @transform_5(%arg0: i32) -> (i32, i32) {
    %c0_i32 = arith.constant 0 : i32
    %c0_i32_0 = arith.constant 0 : i32
    %c0_i32_1 = arith.constant 0 : i32
    return %c0_i32, %c0_i32_0 : i32, i32
  }
  func.func @transform_6(%arg0: i32) -> (i32, i32) {
    %c0_i32 = arith.constant 0 : i32
    %c0_i32_0 = arith.constant 0 : i32
    %c0_i32_1 = arith.constant 0 : i32
    return %c0_i32, %c0_i32_0 : i32, i32
  }
  func.func @transform_7(%arg0: i32) -> (i32, i32) {
    %c0_i32 = arith.constant 0 : i32
    %c0_i32_0 = arith.constant 0 : i32
    %c0_i32_1 = arith.constant 0 : i32
    return %c0_i32, %c0_i32_0 : i32, i32
  }
  func.func @transform_8(%arg0: i32) -> (i32, i32) {
    %c0_i32 = arith.constant 0 : i32
    %c0_i32_0 = arith.constant 0 : i32
    %c0_i32_1 = arith.constant 0 : i32
    return %c0_i32, %c0_i32_0 : i32, i32
  }
  func.func @transform_9(%arg0: i32) -> (i32, i32) {
    %c0_i32 = arith.constant 0 : i32
    %c0_i32_0 = arith.constant 0 : i32
    return %arg0, %c0_i32 : i32, i32
  }
}

</mosaic_0001>

<llo_original>
// kernel: classifier_block_forward.1
$region0: #{classifier_block_forward.1}
  #allocation0 [shape = 'u32[]', space=smem, size = 0x4, offset = 0x4, fixed_abs, tag = 'smem constant byte address 0x4 - core index']
  #allocation1 [shape = 'u32[72,128]{1,0:T(1,128)}', space=vmem, size = 0x9000, scoped, tag = 'internal scratch']
  %s0 = inlined_call_operand.vmem [shape: f32[16,32], index: 0, kind: input, shape index: {}]
  %s1 = inlined_call_operand.vmem [shape: f32[1,32], index: 1, kind: input, shape index: {}]
  %s2 = inlined_call_operand.vmem [shape: f32[1,32], index: 2, kind: input, shape index: {}]
  %s3 = inlined_call_operand.vmem [shape: bf16[32,128], index: 3, kind: input, shape index: {}]
  %s4 = inlined_call_operand.vmem [shape: f32[1,128], index: 4, kind: input, shape index: {}]
  %s5 = inlined_call_operand.vmem [shape: bf16[128,128], index: 5, kind: input, shape index: {}]
  %s6 = inlined_call_operand.vmem [shape: f32[1,128], index: 6, kind: input, shape index: {}]
  %s7 = inlined_call_operand.vmem [shape: bf16[128,128], index: 7, kind: input, shape index: {}]
  %s8 = inlined_call_operand.vmem [shape: f32[1,128], index: 8, kind: input, shape index: {}]
  %s9 = inlined_call_operand.vmem [shape: f32[16,128], index: 9, kind: output, shape index: {}]
  %s10 = sld [smem:[#allocation0]]
  $region69: #{classifier_block_forward.1} parent=0
    _
  %s12 = ssub.s32 1, %s10
  %s13 = scalar_select 0, %s12, %s10
  loop: start=0, step=1, limit=4
  $region2: #{classifier_block_forward.1} parent=0 // loop_pre_header
    _
  $region3: #{classifier_block_forward.1} parent=0 // loop_header
    %s15 = sphi 0, %s19
    %p16 = scmp.ge.s32.totalorder %s15, 4
    %s25 = sphi 0, %s27
    %s28 = sphi 0, %s25
    %s29 = sphi 0, %s28
    %s45 = sphi 0, %s29
    %s49 = sphi 0, %s49
    %s51 = sphi 0, %s49
    %s52 = sphi 0, %s51
    %s66 = sphi 0, %s52
    %s70 = sphi 0, %s70
    %s72 = sphi 0, %s70
    %s73 = sphi 0, %s72
    %s87 = sphi 0, %s73
    %s91 = sphi 0, %s91
    %s93 = sphi 0, %s91
    %s94 = sphi 0, %s93
    %s108 = sphi 0, %s94
    %s112 = sphi 0, %s112
    %s114 = sphi 0, %s112
    %s115 = sphi 0, %s114
    %s129 = sphi 0, %s115
    %s133 = sphi 0, %s133
    %s135 = sphi 0, %s133
    %s136 = sphi 0, %s135
    %s150 = sphi 0, %s136
    %s154 = sphi 0, %s154
    %s156 = sphi 0, %s154
    %s157 = sphi 0, %s156
    %s171 = sphi 0, %s157
    %s175 = sphi 0, %s175
    %s177 = sphi 0, %s175
    %s178 = sphi 0, %s177
    %s192 = sphi 0, %s178
    %s196 = sphi 0, %s196
    %s198 = sphi 0, %s196
    %s199 = sphi 0, %s198
    %s213 = sphi 0, %s199
    %s219 = sphi 0, %s221
    %s222 = sphi 0, %s219
    %s223 = sphi 0, %s222
    %s239 = sphi 0, %s223
  $region4: #{classifier_block_forward.1} parent=0 // loop_header_branch
    %18 = sbr.rel (%p16) target = $region8
  $region5: #{classifier_block_forward.1} parent=0 // loop_body
    %s20 = ssub.s32 %s15, 1
    %s21 = ssub.s32 %s15, 2
    %s22 = sadd.s32 %s15, 1
    %s23 = ssub.s32 %s15, %s22
    %p24 = scmp.eq.s32.totalorder %s23, 0
    %s26 = sadd.s32 %s25, 1
    %s27 = scalar_select %p24, %s25, %s26
    %p30 = pneg %p24
    %p31 = scmp.eq.s32.totalorder %s15, 1
    %p32 = por %p30, %p31
    %p33 = scmp.ne.s32.totalorder %s25, %s28
    %p34 = scmp.eq.s32.totalorder %s15, 0
    %p35 = por %p33, %p34
    %p36 = scmp.ne.s32.totalorder %s25, %s28
    %p37 = scmp.eq.s32.totalorder %s20, 1
    %p38 = por %p36, %p37
    %p39 = scmp.ne.s32.totalorder %s28, %s29
    %p40 = scmp.eq.s32.totalorder %s20, 0
    %p41 = por %p39, %p40
    %p42 = scmp.ne.s32.totalorder %s28, %s29
    %p43 = scmp.eq.s32.totalorder %s21, 1
    %p44 = por %p42, %p43
    %p46 = scmp.ne.s32.totalorder %s29, %s45
    %p47 = scmp.eq.s32.totalorder %s21, 0
    %p48 = por %p46, %p47
    %s50 = sadd.s32 %s49, 1
    %p53 = scmp.eq.s32.totalorder %s15, 1
    %p54 = scmp.ne.s32.totalorder %s49, %s51
    %p55 = scmp.eq.s32.totalorder %s15, 0
    %p56 = por %p54, %p55
    %p57 = scmp.ne.s32.totalorder %s49, %s51
    %p58 = scmp.eq.s32.totalorder %s20, 1
    %p59 = por %p57, %p58
    %p60 = scmp.ne.s32.totalorder %s51, %s52
    %p61 = scmp.eq.s32.totalorder %s20, 0
    %p62 = por %p60, %p61
    %p63 = scmp.ne.s32.totalorder %s51, %s52
    %p64 = scmp.eq.s32.totalorder %s21, 1
    %p65 = por %p63, %p64
    %p67 = scmp.ne.s32.totalorder %s52, %s66
    %p68 = scmp.eq.s32.totalorder %s21, 0
    %p69 = por %p67, %p68
    %s71 = sadd.s32 %s70, 1
    %p74 = scmp.eq.s32.totalorder %s15, 1
    %p75 = scmp.ne.s32.totalorder %s70, %s72
    %p76 = scmp.eq.s32.totalorder %s15, 0
    %p77 = por %p75, %p76
    %p78 = scmp.ne.s32.totalorder %s70, %s72
    %p79 = scmp.eq.s32.totalorder %s20, 1
    %p80 = por %p78, %p79
    %p81 = scmp.ne.s32.totalorder %s72, %s73
    %p82 = scmp.eq.s32.totalorder %s20, 0
    %p83 = por %p81, %p82
    %p84 = scmp.ne.s32.totalorder %s72, %s73
    %p85 = scmp.eq.s32.totalorder %s21, 1
    %p86 = por %p84, %p85
    %p88 = scmp.ne.s32.totalorder %s73, %s87
    %p89 = scmp.eq.s32.totalorder %s21, 0
    %p90 = por %p88, %p89
    %s92 = sadd.s32 %s91, 1
    %p95 = scmp.eq.s32.totalorder %s15, 1
    %p96 = scmp.ne.s32.totalorder %s91, %s93
    %p97 = scmp.eq.s32.totalorder %s15, 0
    %p98 = por %p96, %p97
    %p99 = scmp.ne.s32.totalorder %s91, %s93
    %p100 = scmp.eq.s32.totalorder %s20, 1
    %p101 = por %p99, %p100
    %p102 = scmp.ne.s32.totalorder %s93, %s94
    %p103 = scmp.eq.s32.totalorder %s20, 0
    %p104 = por %p102, %p103
    %p105 = scmp.ne.s32.totalorder %s93, %s94
    %p106 = scmp.eq.s32.totalorder %s21, 1
    %p107 = por %p105, %p106
    %p109 = scmp.ne.s32.totalorder %s94, %s108
    %p110 = scmp.eq.s32.totalorder %s21, 0
    %p111 = por %p109, %p110
    %s113 = sadd.s32 %s112, 1
    %p116 = scmp.eq.s32.totalorder %s15, 1
    %p117 = scmp.ne.s32.totalorder %s112, %s114
    %p118 = scmp.eq.s32.totalorder %s15, 0
    %p119 = por %p117, %p118
    %p120 = scmp.ne.s32.totalorder %s112, %s114
    %p121 = scmp.eq.s32.totalorder %s20, 1
    %p122 = por %p120, %p121
    %p123 = scmp.ne.s32.totalorder %s114, %s115
    %p124 = scmp.eq.s32.totalorder %s20, 0
    %p125 = por %p123, %p124
    %p126 = scmp.ne.s32.totalorder %s114, %s115
    %p127 = scmp.eq.s32.totalorder %s21, 1
    %p128 = por %p126, %p127
    %p130 = scmp.ne.s32.totalorder %s115, %s129
    %p131 = scmp.eq.s32.totalorder %s21, 0
    %p132 = por %p130, %p131
    %s134 = sadd.s32 %s133, 1
    %p137 = scmp.eq.s32.totalorder %s15, 1
    %p138 = scmp.ne.s32.totalorder %s133, %s135
    %p139 = scmp.eq.s32.totalorder %s15, 0
    %p140 = por %p138, %p139
    %p141 = scmp.ne.s32.totalorder %s133, %s135
    %p142 = scmp.eq.s32.totalorder %s20, 1
    %p143 = por %p141, %p142
    %p144 = scmp.ne.s32.totalorder %s135, %s136
    %p145 = scmp.eq.s32.totalorder %s20, 0
    %p146 = por %p144, %p145
    %p147 = scmp.ne.s32.totalorder %s135, %s136
    %p148 = scmp.eq.s32.totalorder %s21, 1
    %p149 = por %p147, %p148
    %p151 = scmp.ne.s32.totalorder %s136, %s150
    %p152 = scmp.eq.s32.totalorder %s21, 0
    %p153 = por %p151, %p152
    %s155 = sadd.s32 %s154, 1
    %p158 = scmp.eq.s32.totalorder %s15, 1
    %p159 = scmp.ne.s32.totalorder %s154, %s156
    %p160 = scmp.eq.s32.totalorder %s15, 0
    %p161 = por %p159, %p160
    %p162 = scmp.ne.s32.totalorder %s154, %s156
    %p163 = scmp.eq.s32.totalorder %s20, 1
    %p164 = por %p162, %p163
    %p165 = scmp.ne.s32.totalorder %s156, %s157
    %p166 = scmp.eq.s32.totalorder %s20, 0
    %p167 = por %p165, %p166
    %p168 = scmp.ne.s32.totalorder %s156, %s157
    %p169 = scmp.eq.s32.totalorder %s21, 1
    %p170 = por %p168, %p169
    %p172 = scmp.ne.s32.totalorder %s157, %s171
    %p173 = scmp.eq.s32.totalorder %s21, 0
    %p174 = por %p172, %p173
    %s176 = sadd.s32 %s175, 1
    %p179 = scmp.eq.s32.totalorder %s15, 1
    %p180 = scmp.ne.s32.totalorder %s175, %s177
    %p181 = scmp.eq.s32.totalorder %s15, 0
    %p182 = por %p180, %p181
    %p183 = scmp.ne.s32.totalorder %s175, %s177
    %p184 = scmp.eq.s32.totalorder %s20, 1
    %p185 = por %p183, %p184
    %p186 = scmp.ne.s32.totalorder %s177, %s178
    %p187 = scmp.eq.s32.totalorder %s20, 0
    %p188 = por %p186, %p187
    %p189 = scmp.ne.s32.totalorder %s177, %s178
    %p190 = scmp.eq.s32.totalorder %s21, 1
    %p191 = por %p189, %p190
    %p193 = scmp.ne.s32.totalorder %s178, %s192
    %p194 = scmp.eq.s32.totalorder %s21, 0
    %p195 = por %p193, %p194
    %s197 = sadd.s32 %s196, 1
    %p200 = scmp.eq.s32.totalorder %s15, 1
    %p201 = scmp.ne.s32.totalorder %s196, %s198
    %p202 = scmp.eq.s32.totalorder %s15, 0
    %p203 = por %p201, %p202
    %p204 = scmp.ne.s32.totalorder %s196, %s198
    %p205 = scmp.eq.s32.totalorder %s20, 1
    %p206 = por %p204, %p205
    %p207 = scmp.ne.s32.totalorder %s198, %s199
    %p208 = scmp.eq.s32.totalorder %s20, 0
    %p209 = por %p207, %p208
    %p210 = scmp.ne.s32.totalorder %s198, %s199
    %p211 = scmp.eq.s32.totalorder %s21, 1
    %p212 = por %p210, %p211
    %p214 = scmp.ne.s32.totalorder %s199, %s213
    %p215 = scmp.eq.s32.totalorder %s21, 0
    %p216 = por %p214, %p215
    %s217 = ssub.s32 %s15, %s22
    %p218 = scmp.eq.s32.totalorder %s217, 0
    %s220 = sadd.s32 %s219, 1
    %s221 = scalar_select %p218, %s219, %s220
    %p224 = pneg %p218
    %p225 = scmp.eq.s32.totalorder %s15, 1
    %p226 = por %p224, %p225
    %p227 = scmp.ne.s32.totalorder %s219, %s222
    %p228 = scmp.eq.s32.totalorder %s15, 0
    %p229 = por %p227, %p228
    %p230 = scmp.ne.s32.totalorder %s219, %s222
    %p231 = scmp.eq.s32.totalorder %s20, 1
    %p232 = por %p230, %p231
    %p233 = scmp.ne.s32.totalorder %s222, %s223
    %p234 = scmp.eq.s32.totalorder %s20, 0
    %p235 = por %p233, %p234
    %p236 = scmp.ne.s32.totalorder %s222, %s223
    %p237 = scmp.eq.s32.totalorder %s21, 1
    %p238 = por %p236, %p237
    %p240 = scmp.ne.s32.totalorder %s223, %s239
    %p241 = scmp.eq.s32.totalorder %s21, 0
    %p242 = por %p240, %p241
    %p243 = scmp.le.s32.totalorder 1, %s15
    %p244 = scmp.lt.s32.totalorder %s15, 3
    %p245 = pnand %p243, %p244
    %p246 = pneg %p245
    // Predicated region
    $region9: #{classifier_block_forward.1} parent=5 // pred_check
      _
    $region10: #{classifier_block_forward.1} parent=5 // pred_check_branch
      %248 = sbr.rel (%p245) target = $region12
    $region11: #{classifier_block_forward.1} parent=5 // pred_region
      %s249 = ssub.s32 %s15, 1
      // Predicated region
      $region13: #{classifier_block_forward.1} parent=11 // pred_check
        %p250 = pneg %p62
      $region14: #{classifier_block_forward.1} parent=11 // pred_check_branch
        %252 = sbr.rel (%p250) target = $region16
      $region15: #{classifier_block_forward.1} parent=11 // pred_region
        _
      $region16: #{classifier_block_forward.1} parent=11 // pred_fallthru
        _
      // Predicated region
      $region17: #{classifier_block_forward.1} parent=11 // pred_check
        %p253 = pneg %p83
      $region18: #{classifier_block_forward.1} parent=11 // pred_check_branch
        %255 = sbr.rel (%p253) target = $region20
      $region19: #{classifier_block_forward.1} parent=11 // pred_region
        _
      $region20: #{classifier_block_forward.1} parent=11 // pred_fallthru
        _
      // Predicated region
      $region21: #{classifier_block_forward.1} parent=11 // pred_check
        %p256 = pneg %p104
      $region22: #{classifier_block_forward.1} parent=11 // pred_check_branch
        %258 = sbr.rel (%p256) target = $region24
      $region23: #{classifier_block_forward.1} parent=11 // pred_region
        _
      $region24: #{classifier_block_forward.1} parent=11 // pred_fallthru
        _
      // Predicated region
      $region25: #{classifier_block_forward.1} parent=11 // pred_check
        %p259 = pneg %p125
      $region26: #{classifier_block_forward.1} parent=11 // pred_check_branch
        %261 = sbr.rel (%p259) target = $region28
      $region27: #{classifier_block_forward.1} parent=11 // pred_region
        _
      $region28: #{classifier_block_forward.1} parent=11 // pred_fallthru
        _
      // Predicated region
      $region29: #{classifier_block_forward.1} parent=11 // pred_check
        %p262 = pneg %p146
      $region30: #{classifier_block_forward.1} parent=11 // pred_check_branch
        %264 = sbr.rel (%p262) target = $region32
      $region31: #{classifier_block_forward.1} parent=11 // pred_region
        _
      $region32: #{classifier_block_forward.1} parent=11 // pred_fallthru
        _
      // Predicated region
      $region33: #{classifier_block_forward.1} parent=11 // pred_check
        %p265 = pneg %p167
      $region34: #{classifier_block_forward.1} parent=11 // pred_check_branch
        %267 = sbr.rel (%p265) target = $region36
      $region35: #{classifier_block_forward.1} parent=11 // pred_region
        _
      $region36: #{classifier_block_forward.1} parent=11 // pred_fallthru
        _
      // Predicated region
      $region37: #{classifier_block_forward.1} parent=11 // pred_check
        %p268 = pneg %p188
      $region38: #{classifier_block_forward.1} parent=11 // pred_check_branch
        %270 = sbr.rel (%p268) target = $region40
      $region39: #{classifier_block_forward.1} parent=11 // pred_region
        _
      $region40: #{classifier_block_forward.1} parent=11 // pred_fallthru
        _
      // Predicated region
      $region41: #{classifier_block_forward.1} parent=11 // pred_check
        %p271 = pneg %p209
      $region42: #{classifier_block_forward.1} parent=11 // pred_check_branch
        %273 = sbr.rel (%p271) target = $region44
      $region43: #{classifier_block_forward.1} parent=11 // pred_region
        _
      $region44: #{classifier_block_forward.1} parent=11 // pred_fallthru
        _
    $region12: #{classifier_block_forward.1} parent=5 // pred_fallthru
      _
    %p274 = scmp.lt.s32.totalorder %s15, 2
    // Predicated region
    $region45: #{classifier_block_forward.1} parent=5 // pred_check
      %p275 = pneg %p274
    $region46: #{classifier_block_forward.1} parent=5 // pred_check_branch
      %277 = sbr.rel (%p275) target = $region48
    $region47: #{classifier_block_forward.1} parent=5 // pred_region
      // Predicated region
      $region49: #{classifier_block_forward.1} parent=47 // pred_check
        %p278 = pneg %p35
      $region50: #{classifier_block_forward.1} parent=47 // pred_check_branch
        %280 = sbr.rel (%p278) target = $region52
      $region51: #{classifier_block_forward.1} parent=47 // pred_region
        %p281 = scmp.lt.s32.totalorder %s15, 1
        %s282 = scalar_select %p281, %s15, 1
        %s283 = smul.addr %s282, 8
        %s284 = scalar_lea.vmem %s0, %s283
      $region52: #{classifier_block_forward.1} parent=47 // pred_fallthru
        _
    $region48: #{classifier_block_forward.1} parent=5 // pred_fallthru
      _
    %p285 = scmp.le.s32.totalorder 1, %s15
    %p286 = scmp.lt.s32.totalorder %s15, 3
    %p287 = pnand %p285, %p286
    %p288 = pneg %p287
    // Predicated region
    $region53: #{classifier_block_forward.1} parent=5 // pred_check
      _
    $region54: #{classifier_block_forward.1} parent=5 // pred_check_branch
      %290 = sbr.rel (%p287) target = $region56
    $region55: #{classifier_block_forward.1} parent=5 // pred_region
      %s291 = ssub.s32 %s15, 1
      %p292 = scmp.lt.s32.totalorder %s20, 1
      %s293 = scalar_select %p292, %s20, 1
      %s294 = smul.addr %s293, 8
      %s295 = scalar_lea.vmem %s0, %s294
      %p296 = pneg %p41
      %p297 = pneg %p38
      %p298 = pneg %p62
      %p299 = pneg %p59
      %p300 = pneg %p83
      %p301 = pneg %p80
      %p302 = pneg %p104
      %p303 = pneg %p101
      %p304 = pneg %p125
      %p305 = pneg %p122
      %p306 = pneg %p146
      %p307 = pneg %p143
      %p308 = pneg %p167
      %p309 = pneg %p164
      %p310 = pneg %p188
      %p311 = pneg %p185
      %p312 = pneg %p209
      %p313 = pneg %p206
      %p314 = pneg %p235
      %p315 = pneg %p232
      %p316 = scmp.lt.s32.totalorder %s20, 1
      %s317 = scalar_select %p316, %s20, 1
      %s318 = smul.addr %s317, 8
      %s319 = scalar_lea.vmem %s9, %s318
      %p320 = scmp.lt.s32.totalorder %s20, 1
      %s321 = scalar_select %p320, %s20, 1
      %s322 = smul.addr %s321, 8
      %s323 = scalar_lea.vmem %s0, %s322
      %p324 = scmp.lt.s32.totalorder %s20, 1
      %s325 = scalar_select %p324, %s20, 1
      %s326 = smul.addr %s325, 8
      %s327 = scalar_lea.vmem %s9, %s326
      %v329 = vld [vmem:[%s323] sm:$0xff]
      %vm330 = vcmask 261120
      %v331 = vsel %vm330, %v329, 0.0
      %332 = vadd.xlane.f32.xlu0 %v331
      %v333 = vpop.xlane.xlu0 %332
      %v334 = vrcp.pop 32.0
      %v335 = vmul.f32 32.0, %v334
      %v336 = vsub.f32 1.0, %v335
      %v337 = vmul.f32 %v334, %v336
      %v338 = vadd.f32 %v334, %v337
      %vm339 = vweird.f32 %v334
      %v340 = vsel %vm339, %v334, %v338
      %v341 = vmul.f32 %v333, %v340
      %v342 = vsub.f32 %v329, %v341
      %v343 = vmul.f32 %v342, %v342
      %v344 = vsel %vm330, %v343, 0.0
      %345 = vadd.xlane.f32.xlu0 %v344
      %v346 = vpop.xlane.xlu0 %345
      %v347 = vmul.f32 %v346, %v340
      %v348 = vadd.f32 %v347, 1e-05
      %v349 = vrsqrt.pop %v348
      %v350 = vmul.f32 %v349, %v348
      %v351 = vmul.f32 %v350, %v349
      %v352 = vmul.f32 0.5, %v351
      %v353 = vsub.f32 1.5, %v352
      %v354 = vmul.f32 %v349, %v353
      %vm355 = vweird.f32 %v348
      %vm356 = vweird.f32 %v349
      %vm357 = vmor %vm355, %vm356
      %v358 = vsel %vm357, %v349, %v354
      %v359 = vmul.f32 %v342, %v358
      %v360 = vld [vmem:[%s1] sm:$0x1]
      %v362 = vperm.slane %v360, 0
      %v364 = vmul.f32 %v359, %v362
      %v365 = vld [vmem:[%s2] sm:$0x1]
      %v367 = vperm.slane %v365, 0
      %v369 = vadd.f32 %v364, %v367
      %v370 = vpack.c.bf16 %v369, %v369
      %v371 = vld [vmem:[%s3] sm:$0xf]
      %v372 = vld [vmem:[%s3 + $0x4] sm:$0xf]
      %v373 = vld [vmem:[%s3 + $0x8] sm:$0xf]
      %v374 = vld [vmem:[%s3 + $0xc] sm:$0xf]
      %v375 = vld [vmem:[%s4] sm:$0x1]
      %v377 = vperm.slane %v375, 0
      %v383 = vunpack.c.l.b16 %v371
      %v384 = vunpack.c.l.b16 %v372
      %v385 = vunpack.c.l.b16 %v373
      %v386 = vunpack.c.l.b16 %v374
      %v387 = vpack.c.b16 %v384, %v383
      %v388 = vpack.c.b16 %v386, %v385
      %v392 = vsel %vm330, %v370, 0
      %394 = vmatpush.bf16.msra.mxu0 0
      %395 = vmatpush.bf16.msra.mxu0 0
      %396 = vmatpush.bf16.msra.mxu0 0
      %397 = vmatpush.bf16.msra.mxu0 0
      %398 = vmatpush.bf16.msra.mxu0 0
      %399 = vmatpush.bf16.msra.mxu0 0
      %400 = vmatpush.bf16.msra.mxu0 %v388
      %401 = vmatpush.bf16.msra.mxu0 %v387
      %402 = vmatmul.bf16.gmra.mxu0 %v392
      %v403 = vpop.f32.mrf.mxu0
      %v404 = vadd.f32 %v377, %v403
      %v405 = vpop.f32.mrf.mxu0
      %406 = vdwg.mxu0
      %v407 = vmax.f32 %v404, 0.0
      %v408 = vpack.c.bf16 %v407, %v407
      %v409 = vld [vmem:[%s5] sm:$0xf]
      %v410 = vld [vmem:[%s5 + $0x4] sm:$0xf]
      %v411 = vld [vmem:[%s5 + $0x8] sm:$0xf]
      %v412 = vld [vmem:[%s5 + $0xc] sm:$0xf]
      %v413 = vld [vmem:[%s5 + $0x10] sm:$0xf]
      %v414 = vld [vmem:[%s5 + $0x14] sm:$0xf]
      %v415 = vld [vmem:[%s5 + $0x18] sm:$0xf]
      %v416 = vld [vmem:[%s5 + $0x1c] sm:$0xf]
      %v417 = vld [vmem:[%s5 + $0x20] sm:$0xf]
      %v418 = vld [vmem:[%s5 + $0x24] sm:$0xf]
      %v419 = vld [vmem:[%s5 + $0x28] sm:$0xf]
      %v420 = vld [vmem:[%s5 + $0x2c] sm:$0xf]
      %v421 = vld [vmem:[%s5 + $0x30] sm:$0xf]
      %v422 = vld [vmem:[%s5 + $0x34] sm:$0xf]
      %v423 = vld [vmem:[%s5 + $0x38] sm:$0xf]
      %v424 = vld [vmem:[%s5 + $0x3c] sm:$0xf]
      %v425 = vld [vmem:[%s6] sm:$0x1]
      %v427 = vperm.slane %v425, 0
      %v445 = vunpack.c.l.b16 %v409
      %v446 = vunpack.c.l.b16 %v410
      %v447 = vunpack.c.l.b16 %v411
      %v448 = vunpack.c.l.b16 %v412
      %v449 = vunpack.c.l.b16 %v413
      %v450 = vunpack.c.l.b16 %v414
      %v451 = vunpack.c.l.b16 %v415
      %v452 = vunpack.c.l.b16 %v416
      %v453 = vunpack.c.l.b16 %v417
      %v454 = vunpack.c.l.b16 %v418
      %v455 = vunpack.c.l.b16 %v419
      %v456 = vunpack.c.l.b16 %v420
      %v457 = vunpack.c.l.b16 %v421
      %v458 = vunpack.c.l.b16 %v422
      %v459 = vunpack.c.l.b16 %v423
      %v460 = vunpack.c.l.b16 %v424
      %v461 = vpack.c.b16 %v446, %v445
      %v462 = vpack.c.b16 %v448, %v447
      %v463 = vpack.c.b16 %v450, %v449
      %v464 = vpack.c.b16 %v452, %v451
      %v465 = vpack.c.b16 %v454, %v453
      %v466 = vpack.c.b16 %v456, %v455
      %v467 = vpack.c.b16 %v458, %v457
      %v468 = vpack.c.b16 %v460, %v459
      %477 = vmatpush.bf16.msra.mxu0 %v468
      %478 = vmatpush.bf16.msra.mxu0 %v467
      %479 = vmatpush.bf16.msra.mxu0 %v466
      %480 = vmatpush.bf16.msra.mxu0 %v465
      %481 = vmatpush.bf16.msra.mxu0 %v464
      %482 = vmatpush.bf16.msra.mxu0 %v463
      %483 = vmatpush.bf16.msra.mxu0 %v462
      %484 = vmatpush.bf16.msra.mxu0 %v461
      %485 = vmatmul.bf16.gmra.mxu0 %v408
      %v486 = vpop.f32.mrf.mxu0
      %v487 = vadd.f32 %v427, %v486
      %v488 = vpop.f32.mrf.mxu0
      %489 = vdwg.mxu0
      %v490 = vmax.f32 %v487, 0.0
      %v491 = vpack.c.bf16 %v490, %v490
      %v492 = vld [vmem:[%s7] sm:$0xf]
      %v493 = vld [vmem:[%s7 + $0x4] sm:$0xf]
      %v494 = vld [vmem:[%s7 + $0x8] sm:$0xf]
      %v495 = vld [vmem:[%s7 + $0xc] sm:$0xf]
      %v496 = vld [vmem:[%s7 + $0x10] sm:$0xf]
      %v497 = vld [vmem:[%s7 + $0x14] sm:$0xf]
      %v498 = vld [vmem:[%s7 + $0x18] sm:$0xf]
      %v499 = vld [vmem:[%s7 + $0x1c] sm:$0xf]
      %v500 = vld [vmem:[%s7 + $0x20] sm:$0xf]
      %v501 = vld [vmem:[%s7 + $0x24] sm:$0xf]
      %v502 = vld [vmem:[%s7 + $0x28] sm:$0xf]
      %v503 = vld [vmem:[%s7 + $0x2c] sm:$0xf]
      %v504 = vld [vmem:[%s7 + $0x30] sm:$0xf]
      %v505 = vld [vmem:[%s7 + $0x34] sm:$0xf]
      %v506 = vld [vmem:[%s7 + $0x38] sm:$0xf]
      %v507 = vld [vmem:[%s7 + $0x3c] sm:$0xf]
      %v508 = vld [vmem:[%s8] sm:$0x1]
      %v510 = vperm.slane %v508, 0
      %v528 = vunpack.c.l.b16 %v492
      %v529 = vunpack.c.l.b16 %v493
      %v530 = vunpack.c.l.b16 %v494
      %v531 = vunpack.c.l.b16 %v495
      %v532 = vunpack.c.l.b16 %v496
      %v533 = vunpack.c.l.b16 %v497
      %v534 = vunpack.c.l.b16 %v498
      %v535 = vunpack.c.l.b16 %v499
      %v536 = vunpack.c.l.b16 %v500
      %v537 = vunpack.c.l.b16 %v501
      %v538 = vunpack.c.l.b16 %v502
      %v539 = vunpack.c.l.b16 %v503
      %v540 = vunpack.c.l.b16 %v504
      %v541 = vunpack.c.l.b16 %v505
      %v542 = vunpack.c.l.b16 %v506
      %v543 = vunpack.c.l.b16 %v507
      %v544 = vpack.c.b16 %v529, %v528
      %v545 = vpack.c.b16 %v531, %v530
      %v546 = vpack.c.b16 %v533, %v532
      %v547 = vpack.c.b16 %v535, %v534
      %v548 = vpack.c.b16 %v537, %v536
      %v549 = vpack.c.b16 %v539, %v538
      %v550 = vpack.c.b16 %v541, %v540
      %v551 = vpack.c.b16 %v543, %v542
      %560 = vmatpush.bf16.msra.mxu0 %v551
      %561 = vmatpush.bf16.msra.mxu0 %v550
      %562 = vmatpush.bf16.msra.mxu0 %v549
      %563 = vmatpush.bf16.msra.mxu0 %v548
      %564 = vmatpush.bf16.msra.mxu0 %v547
      %565 = vmatpush.bf16.msra.mxu0 %v546
      %566 = vmatpush.bf16.msra.mxu0 %v545
      %567 = vmatpush.bf16.msra.mxu0 %v544
      %568 = vmatmul.bf16.gmra.mxu0 %v491
      %v569 = vpop.f32.mrf.mxu0
      %v570 = vadd.f32 %v510, %v569
      %v571 = vpop.f32.mrf.mxu0
      %572 = vdwg.mxu0
      %573 = vst [vmem:[%s327] sm:$0xff] %v570
      %p574 = scmp.lt.s32.totalorder %s20, 1
      %s575 = scalar_select %p574, %s20, 1
      %s576 = smul.addr %s575, 8
      %s577 = scalar_lea.vmem %s9, %s576
      // Predicated region
      $region57: #{classifier_block_forward.1} parent=55 // pred_check
        %p578 = pneg %p232
      $region58: #{classifier_block_forward.1} parent=55 // pred_check_branch
        %580 = sbr.rel (%p578) target = $region60
      $region59: #{classifier_block_forward.1} parent=55 // pred_region
        _
      $region60: #{classifier_block_forward.1} parent=55 // pred_fallthru
        _
    $region56: #{classifier_block_forward.1} parent=5 // pred_fallthru
      _
    %p581 = scmp.le.s32.totalorder 2, %s15
    // Predicated region
    $region61: #{classifier_block_forward.1} parent=5 // pred_check
      %p582 = pneg %p581
    $region62: #{classifier_block_forward.1} parent=5 // pred_check_branch
      %584 = sbr.rel (%p582) target = $region64
    $region63: #{classifier_block_forward.1} parent=5 // pred_region
      %s585 = ssub.s32 %s15, 2
      // Predicated region
      $region65: #{classifier_block_forward.1} parent=63 // pred_check
        %p586 = pneg %p238
      $region66: #{classifier_block_forward.1} parent=63 // pred_check_branch
        %588 = sbr.rel (%p586) target = $region68
      $region67: #{classifier_block_forward.1} parent=63 // pred_region
        %p589 = scmp.lt.s32.totalorder %s21, 1
        %s590 = scalar_select %p589, %s21, 1
        %s591 = smul.addr %s590, 8
        %s592 = scalar_lea.vmem %s9, %s591
      $region68: #{classifier_block_forward.1} parent=63 // pred_fallthru
        _
    $region64: #{classifier_block_forward.1} parent=5 // pred_fallthru
      _
  $region6: #{classifier_block_forward.1} parent=0 // loop_footer
    %s19 = sadd.s32 1, %s15
  $region7: #{classifier_block_forward.1} parent=0 // loop_footer_branch
    %14 = sbr.rel target = $region3
  $region8: #{classifier_block_forward.1} parent=0 // loop_exit
    _

</llo_original>
